<compile_context>
chip_gen: v5e
topology: v5e:2x2
jax: 0.10.0
libtpu: 0.0.40
codegen_flags: <defaults>
</compile_context>

<pallas_src>
import functools

import jax
import jax.numpy as jnp
from jax.experimental import pallas as pl
from jax.experimental.pallas import tpu as pltpu

_NEG_BIG = -1e30  # bias of padded classes: exp() underflows to 0, never argmax


def _mean_pool_kernel(n_ref, x_ref, w1_ref, b1_ref, w2_ref, b2_ref,
                      logits_ref, yhat_ref, yprob_ref,
                      acc_ref, *, has_tail):
    i = pl.program_id(0)
    n_steps = pl.num_programs(0)

    @pl.when(i == 0)
    def _():
        acc_ref[...] = jnp.zeros_like(acc_ref)

    # fc1 + ReLU on this tile of instances (one MXU matmul per tile; feature
    # dims are already lane-dense from the padded weights).
    x = x_ref[...]                                             # (tile, D) f32
    h = jnp.dot(x, w1_ref[...], preferred_element_type=jnp.float32)
    h = jnp.maximum(h + b1_ref[...], 0.0)                      # (tile, F_pad)
    # NOTE: default MXU precision (bf16 passes) is used, matching the previous
    # tolerance-checked behavior; set precision=HIGHEST if bit-faithful f32 is
    # required.

    tile = h.shape[0]
    n_groups = tile // 8                                       # tile is a multiple of 8

    def accumulate(hv):
        # VPU instance reduction: fold 8-row slabs (one f32 vreg each for
        # F_pad=128) onto the resident (8, F_pad) accumulator. No MXU / XLU
        # work per step; the 8->1 cross-sublane reduce happens once at the end.
        partial = hv[0:8, :]
        for g in range(1, n_groups):
            partial = partial + hv[g * 8:(g + 1) * 8, :]
        acc_ref[...] += partial

    if has_tail:
        # Mask (iota/compare/select over the whole tile) only on the last,
        # partial grid step; full tiles take the cheap branch.
        @pl.when(i < n_steps - 1)
        def _():
            accumulate(h)

        @pl.when(i == n_steps - 1)
        def _():
            row = i * tile + jax.lax.broadcasted_iota(jnp.int32, h.shape, 0)
            accumulate(jnp.where(row < n_ref[0], h, 0.0))
    else:
        accumulate(h)

    @pl.when(i == n_steps - 1)
    def _():
        n_f = n_ref[0].astype(jnp.float32)
        # Single cross-sublane (XLU) reduce of the accumulator, then the mean.
        mean_h = jnp.sum(acc_ref[...], axis=0, keepdims=True) / n_f   # (1, F_pad)

        logits = jnp.dot(mean_h, w2_ref[...],
                         preferred_element_type=jnp.float32) + b2_ref[...]
        logits_ref[...] = logits                               # (1, C_pad)

        # Stable softmax (exact divide; runs once). Padded classes sit at
        # ~-1e30 -> exp == 0, so they never contribute.
        m = jnp.max(logits, axis=-1, keepdims=True)
        e = jnp.exp(logits - m)
        yprob_ref[...] = e / jnp.sum(e, axis=-1, keepdims=True)

        # argmax over classes (first occurrence of max, like torch.argmax).
        iota = jax.lax.broadcasted_iota(jnp.int32, logits.shape, 1)
        big = jnp.int32(2 ** 30)
        yhat_ref[...] = jnp.min(jnp.where(logits == m, iota, big),
                                axis=-1, keepdims=True)


def _round_up(v, m):
    return (v + m - 1) // m * m


def mean_pooling_forward(x, w1, b1, w2, b2, *, input_size, tile_n=1024):
    """x: [N, D] with D >= input_size, w1: [input_size, feat], w2: [feat, C].

    Returns (logits[1,C], Y_hat[1], Y_prob[1,C], None, Y_hat[1]) mirroring the
    PyTorch module's forward (the unsqueeze(0) batch dim of 1 is implicit).
    """
    N, D = x.shape
    assert D >= input_size
    assert w1.shape[0] == input_size
    feat_size = w1.shape[1]
    n_classes = w2.shape[1]
    if x.dtype != jnp.float32:
        x = x.astype(jnp.float32)

    # Lane-dense padded parameter layout (tiny one-time ops on the weights;
    # x itself is NOT copied or sliced on the host/XLA side).
    f_pad = _round_up(feat_size, 128)
    c_pad = _round_up(n_classes, 128)
    w1p = jnp.zeros((D, f_pad), jnp.float32)
    w1p = w1p.at[:input_size, :feat_size].set(w1.astype(jnp.float32))
    b1p = jnp.zeros((1, f_pad), jnp.float32)
    b1p = b1p.at[0, :feat_size].set(b1.astype(jnp.float32))
    w2p = jnp.zeros((f_pad, c_pad), jnp.float32)
    w2p = w2p.at[:feat_size, :n_classes].set(w2.astype(jnp.float32))
    b2p = jnp.full((1, c_pad), _NEG_BIG, jnp.float32)
    b2p = b2p.at[0, :n_classes].set(b2.astype(jnp.float32))

    # Instance tiling: one grid step for small N (rounded up to a sublane
    # multiple; overrun rows are masked in-kernel), MXU-sized tiles otherwise.
    # NOTE: for tile_n > ~4096 on v5e, set vmem_limit_bytes explicitly (its
    # default scoped VMEM is 16 MiB); at 1024 everything is a few MB.
    tile_n = _round_up(tile_n, 8)
    if N <= tile_n:
        tile = _round_up(N, 8)
    else:
        tile = tile_n
    grid_n = pl.cdiv(N, tile)
    has_tail = (N % tile) != 0           # static: mask emitted only if needed

    n_arr = jnp.full((1,), N, jnp.int32)  # runtime scalar (scalar prefetch)
    kernel = functools.partial(_mean_pool_kernel, has_tail=has_tail)

    logits_p, yhat, yprob_p = pl.pallas_call(
        kernel,
        out_shape=(
            jax.ShapeDtypeStruct((1, c_pad), jnp.float32),    # padded logits
            jax.ShapeDtypeStruct((1, 1), jnp.int32),          # Y_hat
            jax.ShapeDtypeStruct((1, c_pad), jnp.float32),    # padded Y_prob
        ),
        grid_spec=pltpu.PrefetchScalarGridSpec(
            num_scalar_prefetch=1,
            grid=(grid_n,),
            in_specs=[
                pl.BlockSpec((tile, D), lambda i, n: (i, 0)),      # x tile, full D
                pl.BlockSpec((D, f_pad), lambda i, n: (0, 0)),     # w1 (padded)
                pl.BlockSpec((1, f_pad), lambda i, n: (0, 0)),     # b1
                pl.BlockSpec((f_pad, c_pad), lambda i, n: (0, 0)), # w2 (padded)
                pl.BlockSpec((1, c_pad), lambda i, n: (0, 0)),     # b2
            ],
            out_specs=[
                pl.BlockSpec((1, c_pad), lambda i, n: (0, 0)),
                pl.BlockSpec((1, 1), lambda i, n: (0, 0)),
                pl.BlockSpec((1, c_pad), lambda i, n: (0, 0)),
            ],
            scratch_shapes=[pltpu.VMEM((8, f_pad), jnp.float32)],  # VPU accumulator
        ),
        compiler_params=pltpu.CompilerParams(
            dimension_semantics=("arbitrary",)),   # reduction over instance tiles
    )(n_arr, x, w1p, b1p, w2p, b2p)

    logits = logits_p[:, :n_classes]
    yprob = yprob_p[:, :n_classes]
    yhat_vec = yhat.reshape(1)
    # TODO(synk): torch.argmax returns int64; int32 is used here (TPU-native).
    return (logits, yhat_vec, yprob, None, yhat_vec)


def _reference(x, w1, b1, w2, b2, input_size):
    h = jnp.maximum(x[:, :input_size] @ w1 + b1, 0.0)[None, ...]
    mean_h = jnp.mean(h, axis=1)
    logits = mean_h @ w2 + b2
    return logits, jnp.argmax(logits, axis=-1), jax.nn.softmax(logits, axis=-1)


if __name__ == "__main__":
    input_size, feat_size, n_classes = 32, 32, 8
    D = 40

    key = jax.random.PRNGKey(0)
    kw1, kb1, kw2, kb2, kx1, kx2, kx3 = jax.random.split(key, 7)

    lim1 = 1.0 / (input_size ** 0.5)
    lim2 = 1.0 / (feat_size ** 0.5)
    w1 = jax.random.uniform(kw1, (input_size, feat_size), jnp.float32, -lim1, lim1)
    b1 = jax.random.uniform(kb1, (feat_size,), jnp.float32, -lim1, lim1)
    w2 = jax.random.uniform(kw2, (feat_size, n_classes), jnp.float32, -lim2, lim2)
    b2 = jax.random.uniform(kb2, (n_classes,), jnp.float32, -lim2, lim2)

    # Case 1: N=16  -> single grid step, no masking.
    # Case 2: N=300 -> single grid step, rounded-up tile (304) exercises masking.
    # Case 3: N=2500 -> three 1024-row tiles, exercises accumulator + tail mask.
    for kx, n in ((kx1, 16), (kx2, 300), (kx3, 2500)):
        x = jax.random.normal(kx, (n, D), dtype=jnp.float32)
        logits, y_hat, y_prob, _, _ = mean_pooling_forward(
            x, w1, b1, w2, b2, input_size=input_size)
        jax.block_until_ready((logits, y_hat, y_prob))

        logits_ref, yhat_ref, prob_ref = _reference(x, w1, b1, w2, b2, input_size)
        assert logits.shape == (1, n_classes) and y_prob.shape == (1, n_classes)
        assert jnp.allclose(logits, logits_ref, atol=2e-4, rtol=2e-4), n
        assert jnp.allclose(y_prob, prob_ref, atol=2e-4, rtol=2e-4), n
        assert jnp.all(y_hat == yhat_ref.astype(jnp.int32)), n

    print("KERNEL_OK")
</pallas_src>

<mosaic_0001>
module attributes {stable_mosaic.version = 11 : i64} {
  func.func @_mean_pool_kernel(%arg0: i32, %arg1: memref<1xi32, #tpu.memory_space<smem>>, %arg2: memref<16x40xf32, #tpu.memory_space<vmem>>, %arg3: memref<40x128xf32, #tpu.memory_space<vmem>>, %arg4: memref<1x128xf32, #tpu.memory_space<vmem>>, %arg5: memref<128x128xf32, #tpu.memory_space<vmem>>, %arg6: memref<1x128xf32, #tpu.memory_space<vmem>>, %arg7: memref<1x128xf32, #tpu.memory_space<vmem>>, %arg8: memref<1x1xi32, #tpu.memory_space<vmem>>, %arg9: memref<1x128xf32, #tpu.memory_space<vmem>>, %arg10: memref<8x128xf32, #tpu.memory_space<vmem>>) attributes {dimension_semantics = [#tpu.dimension_semantics<arbitrary>], iteration_bounds = array<i64: 1>, scalar_prefetch = 1 : i64, scratch_operands = 1 : i64, tpu.core_type = #tpu.core_type<tc>, window_params = [{transform_indices = @transform_0, window_bounds = array<i64: 16, 40>}, {pipeline_mode = #tpu.pipeline_mode<synchronous>, transform_indices = @transform_1, window_bounds = array<i64: 40, 128>}, {pipeline_mode = #tpu.pipeline_mode<synchronous>, transform_indices = @transform_2, window_bounds = array<i64: 1, 128>}, {pipeline_mode = #tpu.pipeline_mode<synchronous>, transform_indices = @transform_3, window_bounds = array<i64: 128, 128>}, {pipeline_mode = #tpu.pipeline_mode<synchronous>, transform_indices = @transform_4, window_bounds = array<i64: 1, 128>}, {pipeline_mode = #tpu.pipeline_mode<synchronous>, transform_indices = @transform_5, window_bounds = array<i64: 1, 128>}, {pipeline_mode = #tpu.pipeline_mode<synchronous>, transform_indices = @transform_6, window_bounds = array<i64: 1, 1>}, {pipeline_mode = #tpu.pipeline_mode<synchronous>, transform_indices = @transform_7, window_bounds = array<i64: 1, 128>}]} {
    %c0_i32 = arith.constant 0 : i32
    %0 = arith.cmpi eq, %arg0, %c0_i32 : i32
    %1 = arith.extui %0 : i1 to i32
    %c0_i32_0 = arith.constant 0 : i32
    %2 = arith.cmpi ne, %1, %c0_i32_0 : i32
    scf.if %2 {
      %cst_13 = arith.constant 0.000000e+00 : f32
      %20 = vector.broadcast %cst_13 : f32 to vector<8x128xf32>
      %c0_14 = arith.constant 0 : index
      %c0_15 = arith.constant 0 : index
      %21 = vector.load %arg10[%c0_14, %c0_15] : memref<8x128xf32, #tpu.memory_space<vmem>>, vector<8x128xf32>
      tpu.vector_store %arg10[%c0_14, %c0_15], %20 {strides = array<i32>} : memref<8x128xf32, #tpu.memory_space<vmem>>, vector<8x128xf32>,
    } else {
    }
    %c0 = arith.constant 0 : index
    %c0_1 = arith.constant 0 : index
    %3 = vector.load %arg2[%c0, %c0_1] : memref<16x40xf32, #tpu.memory_space<vmem>>, vector<16x40xf32>
    %c0_2 = arith.constant 0 : index
    %c0_3 = arith.constant 0 : index
    %4 = vector.load %arg3[%c0_2, %c0_3] : memref<40x128xf32, #tpu.memory_space<vmem>>, vector<40x128xf32>
    %cst = arith.constant dense<0.000000e+00> : vector<16x128xf32>
    %5 = tpu.matmul %3, %4, %cst {dimension_numbers = #tpu.dot_dimension_numbers<[1], [0], [0], [1], [0, 0, 1, 1], [], []>} : vector<16x40xf32>, vector<40x128xf32>, vector<16x128xf32> -> vector<16x128xf32>
    %c0_4 = arith.constant 0 : index
    %c0_5 = arith.constant 0 : index
    %6 = vector.load %arg4[%c0_4, %c0_5] : memref<1x128xf32, #tpu.memory_space<vmem>>, vector<1x128xf32>
    %7 = vector.broadcast %6 : vector<1x128xf32> to vector<16x128xf32>
    %8 = arith.addf %5, %7 : vector<16x128xf32>
    %cst_6 = arith.constant 0.000000e+00 : f32
    %9 = vector.broadcast %cst_6 : f32 to vector<16x128xf32>
    %10 = arith.maximumf %8, %9 : vector<16x128xf32>
    %11 = vector.extract_strided_slice %10 {offsets = [0, 0], sizes = [8, 128], strides = [1, 1]} : vector<16x128xf32> to vector<8x128xf32>
    %12 = vector.extract_strided_slice %10 {offsets = [8, 0], sizes = [8, 128], strides = [1, 1]} : vector<16x128xf32> to vector<8x128xf32>
    %13 = arith.addf %11, %12 : vector<8x128xf32>
    %c0_7 = arith.constant 0 : index
    %c0_8 = arith.constant 0 : index
    %14 = vector.load %arg10[%c0_7, %c0_8] : memref<8x128xf32, #tpu.memory_space<vmem>>, vector<8x128xf32>
    %15 = arith.addf %14, %13 : vector<8x128xf32>
    %c0_9 = arith.constant 0 : index
    %c0_10 = arith.constant 0 : index
    %16 = vector.load %arg10[%c0_9, %c0_10] : memref<8x128xf32, #tpu.memory_space<vmem>>, vector<8x128xf32>
    tpu.vector_store %arg10[%c0_9, %c0_10], %15 {strides = array<i32>} : memref<8x128xf32, #tpu.memory_space<vmem>>, vector<8x128xf32>,
    %c0_i32_11 = arith.constant 0 : i32
    %17 = arith.cmpi eq, %arg0, %c0_i32_11 : i32
    %18 = arith.extui %17 : i1 to i32
    %c0_i32_12 = arith.constant 0 : i32
    %19 = arith.cmpi ne, %18, %c0_i32_12 : i32
    scf.if %19 {
      %c0_13 = arith.constant 0 : index
      %20 = memref.load %arg1[%c0_13] : memref<1xi32, #tpu.memory_space<smem>>
      %21 = arith.sitofp %20 : i32 to f32
      %c0_14 = arith.constant 0 : index
      %c0_15 = arith.constant 0 : index
      %22 = vector.load %arg10[%c0_14, %c0_15] : memref<8x128xf32, #tpu.memory_space<vmem>>, vector<8x128xf32>
      %cst_16 = arith.constant dense<0.000000e+00> : vector<128xf32>
      %23 = vector.multi_reduction <add>, %22, %cst_16 [0] : vector<8x128xf32> to vector<128xf32>
      %24 = vector.shape_cast %23 : vector<128xf32> to vector<1x128xf32>
      %25 = vector.broadcast %21 : f32 to vector<1x128xf32>
      %26 = arith.divf %24, %25 : vector<1x128xf32>
      %c0_17 = arith.constant 0 : index
      %c0_18 = arith.constant 0 : index
      %27 = vector.load %arg5[%c0_17, %c0_18] : memref<128x128xf32, #tpu.memory_space<vmem>>, vector<128x128xf32>
      %cst_19 = arith.constant dense<0.000000e+00> : vector<1x128xf32>
      %28 = tpu.matmul %26, %27, %cst_19 {dimension_numbers = #tpu.dot_dimension_numbers<[1], [0], [0], [1], [0, 0, 1, 1], [], []>} : vector<1x128xf32>, vector<128x128xf32>, vector<1x128xf32> -> vector<1x128xf32>
      %c0_20 = arith.constant 0 : index
      %c0_21 = arith.constant 0 : index
      %29 = vector.load %arg6[%c0_20, %c0_21] : memref<1x128xf32, #tpu.memory_space<vmem>>, vector<1x128xf32>
      %30 = arith.addf %28, %29 : vector<1x128xf32>
      %c0_22 = arith.constant 0 : index
      %c0_23 = arith.constant 0 : index
      %31 = vector.load %arg7[%c0_22, %c0_23] : memref<1x128xf32, #tpu.memory_space<vmem>>, vector<1x128xf32>
      tpu.vector_store %arg7[%c0_22, %c0_23], %30 {strides = array<i32>} : memref<1x128xf32, #tpu.memory_space<vmem>>, vector<1x128xf32>,
      %cst_24 = arith.constant dense<0xFF800000> : vector<1xf32>
      %32 = vector.multi_reduction <maximumf>, %30, %cst_24 [1] : vector<1x128xf32> to vector<1xf32>
      %33 = vector.shape_cast %32 : vector<1xf32> to vector<1x1xf32>
      %34 = vector.broadcast %33 : vector<1x1xf32> to vector<1x128xf32>
      %35 = arith.subf %30, %34 : vector<1x128xf32>
      %36 = math.exp %35 : vector<1x128xf32>
      %cst_25 = arith.constant dense<0.000000e+00> : vector<1xf32>
      %37 = vector.multi_reduction <add>, %36, %cst_25 [1] : vector<1x128xf32> to vector<1xf32>
      %38 = vector.shape_cast %37 : vector<1xf32> to vector<1x1xf32>
      %39 = vector.broadcast %38 : vector<1x1xf32> to vector<1x128xf32>
      %40 = arith.divf %36, %39 : vector<1x128xf32>
      %c0_26 = arith.constant 0 : index
      %c0_27 = arith.constant 0 : index
      %41 = vector.load %arg9[%c0_26, %c0_27] : memref<1x128xf32, #tpu.memory_space<vmem>>, vector<1x128xf32>
      tpu.vector_store %arg9[%c0_26, %c0_27], %40 {strides = array<i32>} : memref<1x128xf32, #tpu.memory_space<vmem>>, vector<1x128xf32>,
      %42 = tpu.iota {dimensions = array<i32: 1>} : vector<1x128xi32>
      %43 = vector.broadcast %33 : vector<1x1xf32> to vector<1x128xf32>
      %44 = arith.cmpf oeq, %30, %43 : vector<1x128xf32>
      %c1073741824_i32 = arith.constant 1073741824 : i32
      %45 = vector.broadcast %c1073741824_i32 : i32 to vector<1x128xi32>
      %46 = arith.select %44, %42, %45 : vector<1x128xi1>, vector<1x128xi32>
      %cst_28 = arith.constant dense<2147483647> : vector<1xi32>
      %47 = vector.multi_reduction <minsi>, %46, %cst_28 [1] : vector<1x128xi32> to vector<1xi32>
      %48 = vector.shape_cast %47 : vector<1xi32> to vector<1x1xi32>
      %c0_29 = arith.constant 0 : index
      %c0_30 = arith.constant 0 : index
      %49 = vector.load %arg8[%c0_29, %c0_30] : memref<1x1xi32, #tpu.memory_space<vmem>>, vector<1x1xi32>
      tpu.vector_store %arg8[%c0_29, %c0_30], %48 {strides = array<i32>} : memref<1x1xi32, #tpu.memory_space<vmem>>, vector<1x1xi32>,
    } else {
    }
    return
  }
  func.func @transform_0(%arg0: i32, %arg1: memref<1xi32, #tpu.memory_space<smem>>) -> (i32, i32) {
    %c0_i32 = arith.constant 0 : i32
    %c0_i32_0 = arith.constant 0 : i32
    return %arg0, %c0_i32 : i32, i32
  }
  func.func @transform_1(%arg0: i32, %arg1: memref<1xi32, #tpu.memory_space<smem>>) -> (i32, i32) {
    %c0_i32 = arith.constant 0 : i32
    %c0_i32_0 = arith.constant 0 : i32
    %c0_i32_1 = arith.constant 0 : i32
    return %c0_i32, %c0_i32_0 : i32, i32
  }
  func.func @transform_2(%arg0: i32, %arg1: memref<1xi32, #tpu.memory_space<smem>>) -> (i32, i32) {
    %c0_i32 = arith.constant 0 : i32
    %c0_i32_0 = arith.constant 0 : i32
    %c0_i32_1 = arith.constant 0 : i32
    return %c0_i32, %c0_i32_0 : i32, i32
  }
  func.func @transform_3(%arg0: i32, %arg1: memref<1xi32, #tpu.memory_space<smem>>) -> (i32, i32) {
    %c0_i32 = arith.constant 0 : i32
    %c0_i32_0 = arith.constant 0 : i32
    %c0_i32_1 = arith.constant 0 : i32
    return %c0_i32, %c0_i32_0 : i32, i32
  }
  func.func @transform_4(%arg0: i32, %arg1: memref<1xi32, #tpu.memory_space<smem>>) -> (i32, i32) {
    %c0_i32 = arith.constant 0 : i32
    %c0_i32_0 = arith.constant 0 : i32
    %c0_i32_1 = arith.constant 0 : i32
    return %c0_i32, %c0_i32_0 : i32, i32
  }
  func.func @transform_5(%arg0: i32, %arg1: memref<1xi32, #tpu.memory_space<smem>>) -> (i32, i32) {
    %c0_i32 = arith.constant 0 : i32
    %c0_i32_0 = arith.constant 0 : i32
    %c0_i32_1 = arith.constant 0 : i32
    return %c0_i32, %c0_i32_0 : i32, i32
  }
  func.func @transform_6(%arg0: i32, %arg1: memref<1xi32, #tpu.memory_space<smem>>) -> (i32, i32) {
    %c0_i32 = arith.constant 0 : i32
    %c0_i32_0 = arith.constant 0 : i32
    %c0_i32_1 = arith.constant 0 : i32
    return %c0_i32, %c0_i32_0 : i32, i32
  }
  func.func @transform_7(%arg0: i32, %arg1: memref<1xi32, #tpu.memory_space<smem>>) -> (i32, i32) {
    %c0_i32 = arith.constant 0 : i32
    %c0_i32_0 = arith.constant 0 : i32
    %c0_i32_1 = arith.constant 0 : i32
    return %c0_i32, %c0_i32_0 : i32, i32
  }
}

</mosaic_0001>

<llo_original>
// kernel: tpu_custom_call.1
$region0: #{tpu_custom_call.1}
  #allocation0 [shape = 'u32[]', space=smem, size = 0x4, offset = 0x4, fixed_abs, tag = 'smem constant byte address 0x4 - core index']
  #allocation1 [shape = 'u32[72,128]{1,0:T(1,128)}', space=vmem, size = 0x9000, scoped, tag = 'internal scratch']
  #allocation2 [shape = 'f32[8,128]{1,0:T(8,128)}', space=vmem, size = 0x1000, scoped, tag = 'scratch operand']
  #allocation3 [shape = 's32[1]{0}', space=sflag, size = 0x4, scoped, tag = 'scoped memory for tpu_custom_call.1']
  #allocation4 [shape = 's32[1]{0:T(128)S(6)}', space=smem, size = 0x200, scoped, tag = 'prefetched SMEM operand 0']
  %s0 = inlined_call_operand.<no memory space> [shape: s32[1], index: 0, kind: input, shape index: {}]
  %s1 = inlined_call_operand.hbm [shape: f32[16,40], index: 1, kind: input, shape index: {}]
  %s2 = inlined_call_operand.hbm [shape: f32[40,128], index: 2, kind: input, shape index: {}]
  %s3 = inlined_call_operand.vmem [shape: f32[1,128], index: 3, kind: input, shape index: {}]
  %s4 = inlined_call_operand.hbm [shape: f32[128,128], index: 4, kind: input, shape index: {}]
  %s5 = inlined_call_operand.vmem [shape: f32[1,128], index: 5, kind: input, shape index: {}]
  %s6 = inlined_call_operand.hbm [shape: f32[1,128], index: 6, kind: output, shape index: {0}]
  %s7 = inlined_call_operand.hbm [shape: s32[1,1], index: 7, kind: output, shape index: {1}]
  %s8 = inlined_call_operand.hbm [shape: f32[1,128], index: 8, kind: output, shape index: {2}]
  %9 = xla_tuple %s6, %s7, %s8
  %s10 = sld [smem:[#allocation0]]
  $region66: #{tpu_custom_call.1} parent=0
    _
  %s12 = ssub.s32 1, %s10
  %s13 = scalar_select 0, %s12, %s10
  %14 = sst [smem:[#allocation4]] %s0
  $region1: #{tpu_custom_call.1} parent=0
    #allocation5 [shape = 'u8[8192]{0}', space=vmem, size = 0x2000, scoped, tag = 'input window, operand 1, single buffered']
    #allocation6 [shape = 's32[1]{0}', space=sflag, size = 0x4, scoped, tag = 'scoped memory for tpu_custom_call.1']
    #allocation7 [shape = 's32[1]{0}', space=sflag, size = 0x4, scoped, tag = 'scoped memory for tpu_custom_call.1']
    #allocation8 [shape = 'u8[20480]{0}', space=vmem, size = 0x5000, scoped, tag = 'input window, operand 2, single buffered']
    #allocation9 [shape = 's32[1]{0}', space=sflag, size = 0x4, scoped, tag = 'scoped memory for tpu_custom_call.1']
    #allocation10 [shape = 'u8[65536]{0}', space=vmem, size = 0x10000, scoped, tag = 'input window, operand 4, single buffered']
    #allocation11 [shape = 'u8[512]{0}', space=vmem, size = 0x400, scoped, tag = 'output window, operand 0, single buffered']
    #allocation12 [shape = 'u8[512]{0}', space=vmem, size = 0x400, scoped, tag = 'output window, operand 1, single buffered']
    #allocation13 [shape = 's32[1]{0}', space=sflag, size = 0x4, scoped, tag = 'scoped memory for tpu_custom_call.1']
    #allocation14 [shape = 'u8[512]{0}', space=vmem, size = 0x400, scoped, tag = 'output window, operand 2, single buffered']
    %15 = vsyncpa [#allocation6], 0
    %16 = vsyncpa [#allocation9], 0
    %17 = vsyncpa [#allocation7], 0
    %18 = vsyncpa [#allocation13], 0
    // Predicated region
    $region2: #{tpu_custom_call.1} parent=1 // pred_check
      _
    $region3: #{tpu_custom_call.1} parent=1 // pred_check_branch
      %20 = sbr.rel (0) target = $region5
    $region4: #{tpu_custom_call.1} parent=1 // pred_region
      %22 = vsyncadd [#allocation6], 0
      %s23 = sshll.u32 %s1, 4
      %s24 = int_to_ptr.hbm [resolvable:$true] %s23
      %s25 = sshll.u32 [#allocation5], 4
      %s26 = int_to_ptr.vmem [resolvable:$true] %s25
      %31 = dma.hbm_to_vmem [thread:$0]  %s24, 256, %s26, [#allocation6], 128, 128, 8
    $region5: #{tpu_custom_call.1} parent=1 // pred_fallthru
      _
    // Predicated region
    $region6: #{tpu_custom_call.1} parent=1 // pred_check
      _
    $region7: #{tpu_custom_call.1} parent=1 // pred_check_branch
      %33 = sbr.rel (0) target = $region9
    $region8: #{tpu_custom_call.1} parent=1 // pred_region
      %35 = vsyncadd [#allocation9], 0
      %s36 = sshll.u32 %s2, 4
      %s37 = int_to_ptr.hbm [resolvable:$true] %s36
      %s38 = sshll.u32 [#allocation8], 4
      %s39 = int_to_ptr.vmem [resolvable:$true] %s38
      %44 = dma.hbm_to_vmem [thread:$0]  %s37, 640, %s39, [#allocation9], 128, 128, 8
    $region9: #{tpu_custom_call.1} parent=1 // pred_fallthru
      _
    // Predicated region
    $region10: #{tpu_custom_call.1} parent=1 // pred_check
      _
    $region11: #{tpu_custom_call.1} parent=1 // pred_check_branch
      %46 = sbr.rel (0) target = $region13
    $region12: #{tpu_custom_call.1} parent=1 // pred_region
      _
    $region13: #{tpu_custom_call.1} parent=1 // pred_fallthru
      _
    // Predicated region
    $region14: #{tpu_custom_call.1} parent=1 // pred_check
      _
    $region15: #{tpu_custom_call.1} parent=1 // pred_check_branch
      %48 = sbr.rel (0) target = $region17
    $region16: #{tpu_custom_call.1} parent=1 // pred_region
      %50 = vsyncadd [#allocation9], 0
      %s51 = sshll.u32 %s4, 4
      %s52 = int_to_ptr.hbm [resolvable:$true] %s51
      %s53 = sshll.u32 [#allocation10], 4
      %s54 = int_to_ptr.vmem [resolvable:$true] %s53
      %59 = dma.hbm_to_vmem [thread:$0]  %s52, 2048, %s54, [#allocation9], 128, 128, 8
    $region17: #{tpu_custom_call.1} parent=1 // pred_fallthru
      _
    // Predicated region
    $region18: #{tpu_custom_call.1} parent=1 // pred_check
      _
    $region19: #{tpu_custom_call.1} parent=1 // pred_check_branch
      %61 = sbr.rel (0) target = $region21
    $region20: #{tpu_custom_call.1} parent=1 // pred_region
      _
    $region21: #{tpu_custom_call.1} parent=1 // pred_fallthru
      _
    // Predicated region
    $region22: #{tpu_custom_call.1} parent=1 // pred_check
      _
    $region23: #{tpu_custom_call.1} parent=1 // pred_check_branch
      %63 = sbr.rel (0) target = $region25
    $region24: #{tpu_custom_call.1} parent=1 // pred_region
      %65 = dma.done [#allocation6], 256
    $region25: #{tpu_custom_call.1} parent=1 // pred_fallthru
      _
    // Predicated region
    $region26: #{tpu_custom_call.1} parent=1 // pred_check
      _
    $region27: #{tpu_custom_call.1} parent=1 // pred_check_branch
      %67 = sbr.rel (0) target = $region29
    $region28: #{tpu_custom_call.1} parent=1 // pred_region
      %69 = dma.done [#allocation9], 640
    $region29: #{tpu_custom_call.1} parent=1 // pred_fallthru
      _
    // Predicated region
    $region30: #{tpu_custom_call.1} parent=1 // pred_check
      _
    $region31: #{tpu_custom_call.1} parent=1 // pred_check_branch
      %71 = sbr.rel (0) target = $region33
    $region32: #{tpu_custom_call.1} parent=1 // pred_region
      %73 = dma.done [#allocation9], 2048
    $region33: #{tpu_custom_call.1} parent=1 // pred_fallthru
      _
    %p74 = scmp.eq.s32.totalorder 0, 0
    // Predicated region
    $region34: #{tpu_custom_call.1} parent=1 // pred_check
      %p75 = pneg %p74
    $region35: #{tpu_custom_call.1} parent=1 // pred_check_branch
      %77 = sbr.rel (%p75) target = $region37
    $region36: #{tpu_custom_call.1} parent=1 // pred_region
      %78 = vst [vmem:[#allocation2] sm:$0xff] 0.0
    $region37: #{tpu_custom_call.1} parent=1 // pred_fallthru
      _
    %v79 = vld [vmem:[#allocation5] sm:$0xff]
    %v80 = vld [vmem:[#allocation5 + $0x8] sm:$0xff]
    %v81 = vld [vmem:[#allocation8] sm:$0xff]
    %v82 = vld [vmem:[#allocation8 + $0x8] sm:$0xff]
    %v83 = vld [vmem:[#allocation8 + $0x10] sm:$0xff]
    %v84 = vld [vmem:[#allocation8 + $0x18] sm:$0xff]
    %v85 = vld [vmem:[#allocation8 + $0x20] sm:$0xff]
    %v86 = vld [vmem:[%s3] sm:$0x1]
    %v88 = vperm.slane %v86, 0
    %vm90 = vcmask 326656
    %v92 = vsel %vm90, %v79, 0
    %v95 = vsel %vm90, %v80, 0
    %97 = vmatpush.msra.mxu0 0.0
    %98 = vmatpush.msra.mxu0 0.0
    %99 = vmatpush.msra.mxu0 0.0
    %100 = vmatpush.msra.mxu0 0.0
    %101 = vmatpush.msra.mxu0 0.0
    %102 = vmatpush.msra.mxu0 0.0
    %103 = vmatpush.msra.mxu0 0.0
    %104 = vmatpush.msra.mxu0 0.0
    %105 = vmatpush.msra.mxu0 0.0
    %106 = vmatpush.msra.mxu0 0.0
    %107 = vmatpush.msra.mxu0 0.0
    %108 = vmatpush.msra.mxu0 %v85
    %109 = vmatpush.msra.mxu0 %v84
    %110 = vmatpush.msra.mxu0 %v83
    %111 = vmatpush.msra.mxu0 %v82
    %112 = vmatpush.msra.mxu0 %v81
    %113 = vmatmul.f32.gmra.mxu0 %v92
    %v114 = vpop.f32.mrf.mxu0
    %v115 = vadd.f32 %v88, %v114
    %116 = vmatmul.f32.gmra.mxu0 %v95
    %v117 = vpop.f32.mrf.mxu0
    %v118 = vadd.f32 %v88, %v117
    %119 = vdwg.mxu0
    %v120 = vmax.f32 %v115, 0.0
    %v121 = vmax.f32 %v118, 0.0
    %v122 = vadd.f32 %v120, %v121
    %v123 = vld [vmem:[#allocation2] sm:$0xff]
    %v124 = vadd.f32 %v123, %v122
    %125 = vst [vmem:[#allocation2] sm:$0xff] %v124
    // Predicated region
    $region38: #{tpu_custom_call.1} parent=1 // pred_check
      %p126 = pneg %p74
    $region39: #{tpu_custom_call.1} parent=1 // pred_check_branch
      %128 = sbr.rel (%p126) target = $region41
    $region40: #{tpu_custom_call.1} parent=1 // pred_region
      %s129 = sld [smem:[#allocation4]]
      %s130 = scvt.s32.f32 %s129
      %v131 = vld [vmem:[#allocation2] sm:$0xff]
      %v132 = vrot.slane %v131, 4
      %v133 = vadd.f32 %v131, %v132
      %v134 = vrot.slane %v133, 2
      %v135 = vadd.f32 %v133, %v134
      %v136 = vrot.slane %v135, 1
      %v137 = vadd.f32 %v135, %v136
      %v138 = vstv %s130
      %v139 = vrcp.pop %v138
      %v140 = vmul.f32 %v138, %v139
      %v141 = vsub.f32 1.0, %v140
      %v142 = vmul.f32 %v139, %v141
      %v143 = vadd.f32 %v139, %v142
      %vm144 = vweird.f32 %v138
      %vm145 = vweird.f32 %v139
      %vm146 = vmor %vm144, %vm145
      %v147 = vsel %vm146, %v139, %v143
      %v148 = vand.u32 2147483647, %v138
      %vm149 = vcmp.eq.f32.partialorder %v148, 8.507059e+37
      %v150 = vand.u32 %v138, 2147483648
      %v151 = vor.u32 1.1754944e-38, %v150
      %v152 = vsel %vm149, %v151, %v147
      %v153 = vmul.f32 %v137, %v152
      %v154 = vld [vmem:[#allocation10] sm:$0xff]
      %v155 = vld [vmem:[#allocation10 + $0x8] sm:$0xff]
      %v156 = vld [vmem:[#allocation10 + $0x10] sm:$0xff]
      %v157 = vld [vmem:[#allocation10 + $0x18] sm:$0xff]
      %v158 = vld [vmem:[#allocation10 + $0x20] sm:$0xff]
      %v159 = vld [vmem:[#allocation10 + $0x28] sm:$0xff]
      %v160 = vld [vmem:[#allocation10 + $0x30] sm:$0xff]
      %v161 = vld [vmem:[#allocation10 + $0x38] sm:$0xff]
      %v162 = vld [vmem:[#allocation10 + $0x40] sm:$0xff]
      %v163 = vld [vmem:[#allocation10 + $0x48] sm:$0xff]
      %v164 = vld [vmem:[#allocation10 + $0x50] sm:$0xff]
      %v165 = vld [vmem:[#allocation10 + $0x58] sm:$0xff]
      %v166 = vld [vmem:[#allocation10 + $0x60] sm:$0xff]
      %v167 = vld [vmem:[#allocation10 + $0x68] sm:$0xff]
      %v168 = vld [vmem:[#allocation10 + $0x70] sm:$0xff]
      %v169 = vld [vmem:[#allocation10 + $0x78] sm:$0xff]
      %v170 = vld [vmem:[%s5] sm:$0x1]
      %171 = vmatpush.msra.mxu0 %v169
      %172 = vmatpush.msra.mxu0 %v168
      %173 = vmatpush.msra.mxu0 %v167
      %174 = vmatpush.msra.mxu0 %v166
      %175 = vmatpush.msra.mxu0 %v165
      %176 = vmatpush.msra.mxu0 %v164
      %177 = vmatpush.msra.mxu0 %v163
      %178 = vmatpush.msra.mxu0 %v162
      %179 = vmatpush.msra.mxu0 %v161
      %180 = vmatpush.msra.mxu0 %v160
      %181 = vmatpush.msra.mxu0 %v159
      %182 = vmatpush.msra.mxu0 %v158
      %183 = vmatpush.msra.mxu0 %v157
      %184 = vmatpush.msra.mxu0 %v156
      %185 = vmatpush.msra.mxu0 %v155
      %186 = vmatpush.msra.mxu0 %v154
      %187 = vmatmul.f32.gmra.mxu0 %v153
      %v188 = vpop.f32.mrf.mxu0
      %v189 = vadd.f32 %v170, %v188
      %190 = vdwg.mxu0
      %191 = vst [vmem:[#allocation11] sm:$0x1] %v189
      %vm192 = vcmask 1040384
      %v193 = vsel %vm192, %v189, -inf
      %194 = vmax.xlane.f32.xlu0 %v193
      %v195 = vpop.xlane.xlu0 %194
      %v196 = vsub.f32 %v189, %v195
      %v197 = vmul.f32 %v196, 1.442695
      %v198 = vpow.pop %v197
      %v199 = vsel %vm192, %v198, 0.0
      %200 = vadd.xlane.f32.xlu0 %v199
      %v201 = vpop.xlane.xlu0 %200
      %v202 = vrcp.pop %v201
      %v203 = vmul.f32 %v201, %v202
      %v204 = vsub.f32 1.0, %v203
      %v205 = vmul.f32 %v202, %v204
      %v206 = vadd.f32 %v202, %v205
      %vm207 = vweird.f32 %v201
      %vm208 = vweird.f32 %v202
      %vm209 = vmor %vm207, %vm208
      %v210 = vsel %vm209, %v202, %v206
      %v211 = vand.u32 2147483647, %v201
      %vm212 = vcmp.eq.f32.partialorder %v211, 8.507059e+37
      %v213 = vand.u32 %v201, 2147483648
      %v214 = vor.u32 1.1754944e-38, %v213
      %v215 = vsel %vm212, %v214, %v210
      %v216 = vmul.f32 %v198, %v215
      %217 = vst [vmem:[#allocation14] sm:$0x1] %v216
      %v218 = vlaneseq
      %v219 = vand.u32 %v218, 127
      %vm220 = vcmp.eq.f32.partialorder %v189, %v195
      %v221 = vsel %vm220, %v219, 1073741824
      %v222 = vsel %vm192, %v221, 2147483647
      %v223 = vand.u32 %v222, 65535
      %v224 = vshra.s32 %v222, 16
      %v225 = vcvt.s32.f32 %v223
      %v226 = vcvt.s32.f32 %v224
      %227 = vmin.xlane.f32.xlu0 %v226
      %v228 = vpop.xlane.xlu0 %227
      %vm229 = vcmp.eq.f32.partialorder %v226, %v228
      %v230 = vsel %vm229, %v225, inf
      %231 = vmin.xlane.f32.xlu0 %v230
      %v232 = vpop.xlane.xlu0 %231
      %v233 = vcvt.f32.s32 %v232
      %v234 = vcvt.f32.s32 %v228
      %v235 = vshll.u32 %v234, 16
      %v236 = vadd.s32 %v235, %v233
      %vm237 = vcmask 0
      %238 = vst.msk [vmem:[#allocation12] sm:$0x1] %vm237, %v236
    $region41: #{tpu_custom_call.1} parent=1 // pred_fallthru
      _
    // Predicated region
    $region42: #{tpu_custom_call.1} parent=1 // pred_check
      _
    $region43: #{tpu_custom_call.1} parent=1 // pred_check_branch
      %240 = sbr.rel (0) target = $region45
    $region44: #{tpu_custom_call.1} parent=1 // pred_region
      %242 = vsyncadd [#allocation7], 0
      %s244 = sshll.u32 [#allocation11], 4
      %s245 = int_to_ptr.vmem [resolvable:$true] %s244
      %s246 = sshll.u32 %s6, 4
      %s247 = int_to_ptr.hbm [resolvable:$true] %s246
      %249 = dma.vmem_to_hbm [thread:$0]  %s245, 16, %s247, [#allocation7]
    $region45: #{tpu_custom_call.1} parent=1 // pred_fallthru
      _
    // Predicated region
    $region46: #{tpu_custom_call.1} parent=1 // pred_check
      _
    $region47: #{tpu_custom_call.1} parent=1 // pred_check_branch
      %251 = sbr.rel (0) target = $region49
    $region48: #{tpu_custom_call.1} parent=1 // pred_region
      %253 = vsyncadd [#allocation13], 0
      %s255 = sshll.u32 [#allocation12], 4
      %s256 = int_to_ptr.vmem [resolvable:$true] %s255
      %s257 = sshll.u32 %s7, 4
      %s258 = int_to_ptr.hbm [resolvable:$true] %s257
      %260 = dma.vmem_to_hbm [thread:$0]  %s256, 16, %s258, [#allocation13]
    $region49: #{tpu_custom_call.1} parent=1 // pred_fallthru
      _
    // Predicated region
    $region50: #{tpu_custom_call.1} parent=1 // pred_check
      _
    $region51: #{tpu_custom_call.1} parent=1 // pred_check_branch
      %262 = sbr.rel (0) target = $region53
    $region52: #{tpu_custom_call.1} parent=1 // pred_region
      %264 = vsyncadd [#allocation13], 0
      %s266 = sshll.u32 [#allocation14], 4
      %s267 = int_to_ptr.vmem [resolvable:$true] %s266
      %s268 = sshll.u32 %s8, 4
      %s269 = int_to_ptr.hbm [resolvable:$true] %s268
      %271 = dma.vmem_to_hbm [thread:$0]  %s267, 16, %s269, [#allocation13]
    $region53: #{tpu_custom_call.1} parent=1 // pred_fallthru
      _
    // Predicated region
    $region54: #{tpu_custom_call.1} parent=1 // pred_check
      _
    $region55: #{tpu_custom_call.1} parent=1 // pred_check_branch
      %273 = sbr.rel (0) target = $region57
    $region56: #{tpu_custom_call.1} parent=1 // pred_region
      %275 = dma.done [#allocation7], 16
    $region57: #{tpu_custom_call.1} parent=1 // pred_fallthru
      _
    // Predicated region
    $region58: #{tpu_custom_call.1} parent=1 // pred_check
      _
    $region59: #{tpu_custom_call.1} parent=1 // pred_check_branch
      %277 = sbr.rel (0) target = $region61
    $region60: #{tpu_custom_call.1} parent=1 // pred_region
      %279 = dma.done [#allocation13], 16
    $region61: #{tpu_custom_call.1} parent=1 // pred_fallthru
      _
    // Predicated region
    $region62: #{tpu_custom_call.1} parent=1 // pred_check
      _
    $region63: #{tpu_custom_call.1} parent=1 // pred_check_branch
      %281 = sbr.rel (0) target = $region65
    $region64: #{tpu_custom_call.1} parent=1 // pred_region
      %283 = dma.done [#allocation13], 16
    $region65: #{tpu_custom_call.1} parent=1 // pred_fallthru
      _
    %284 = vsyncpa [#allocation6], 1
    %285 = vsyncpa [#allocation9], 1
    %286 = vsyncpa [#allocation7], 1
    %287 = vsyncpa [#allocation13], 1

</llo_original>
